<compile_context>
chip_gen: v7x
topology: tpu7x:2x2x1
jax: 0.10.0
libtpu: 0.0.40
codegen_flags: <defaults>
</compile_context>

<pallas_src>
import functools

import jax
import jax.numpy as jnp
from jax import lax
from jax.experimental import pallas as pl
from jax.experimental.pallas import tpu as pltpu


def lstm_head_kernel(x_ref, w_ih_ref, w_hh_ref, b_ref, w_out_ref, b_out_ref,
                     out_ref, xw_ref, hseq_ref, *, T, B):
    """Fused LSTM recurrence + output projection.

    x_ref:     (T*B, F)    time-major, batch padded to a multiple of 8
    w_ih_ref:  (F, 4H)     pre-transposed
    w_hh_ref:  (H, 4H)     pre-transposed
    b_ref:     (1, 4H)     b_ih + b_hh
    w_out_ref: (H, Op)     pre-transposed, lane-padded to Op (multiple of 128)
    b_out_ref: (1, Op)
    out_ref:   (T*B, Op)   lane-dense output
    xw_ref:    (T*B, 4H)   VMEM scratch: precomputed input contribution
    hseq_ref:  (T*B, H)    VMEM scratch: per-step hidden states
    """
    H = w_hh_ref.shape[0]

    # (1) Input contribution + bias for ALL timesteps in one MXU matmul
    #     (off the recurrence critical path). Parked in VMEM scratch.
    xw_ref[...] = (jnp.dot(x_ref[...], w_ih_ref[...],
                           preferred_element_type=jnp.float32)
                   + b_ref[...])                               # (T*B, 4H)

    w_hh = w_hh_ref[...]                                       # (H, 4H) hoisted

    h = jnp.zeros((B, H), jnp.float32)
    c = jnp.zeros((B, H), jnp.float32)

    # (2) Static unroll over time. Per-step critical path:
    #     dot(h, w_hh) + add + 1x sigmoid (full 4H lanes) + 2x tanh + elementwise.
    for t in range(T):
        gates = xw_ref[pl.ds(t * B, B), :] + jnp.dot(
            h, w_hh, preferred_element_type=jnp.float32)       # (B, 4H)
        sig = jax.nn.sigmoid(gates)                            # one EUP pass
        i_g = sig[:, 0 * H:1 * H]
        f_g = sig[:, 1 * H:2 * H]
        o_g = sig[:, 3 * H:4 * H]
        g_g = jnp.tanh(gates[:, 2 * H:3 * H])
        c = f_g * c + i_g * g_g
        h = o_g * jnp.tanh(c)
        hseq_ref[pl.ds(t * B, B), :] = h                       # sublane-aligned store

    # (3) Output projection as one MXU matmul; single full-tile, lane-dense store.
    out_ref[...] = (jnp.dot(hseq_ref[...], w_out_ref[...],
                            preferred_element_type=jnp.float32)
                    + b_out_ref[...]).astype(out_ref.dtype)


@jax.jit
def lstm_head_forward(x, w_ih, w_hh, b_ih, b_hh, w_out, b_out):
    """x: (B, T, F) batch_first; PyTorch-shaped params:
         w_ih: (4H, F), w_hh: (4H, H), b_ih/b_hh: (4H,),
         w_out: (O, H), b_out: (O,)
       returns y: (B, T, O)  == LSTMHead.forward(x)[0] with zero initial state.
    """
    B, T, F = x.shape
    H = w_hh.shape[1]
    O = w_out.shape[0]

    Bp = ((B + 7) // 8) * 8           # pad batch to a full sublane group
    Op = ((O + 127) // 128) * 128     # pad output features to full lanes

    # time-major + batch pad, flattened to 2D for clean (8,128)-tiled matmuls.
    x_tm = jnp.transpose(x, (1, 0, 2)).astype(jnp.float32)          # (T, B, F)
    x_tm = jnp.pad(x_tm, ((0, 0), (0, Bp - B), (0, 0)))             # (T, Bp, F)
    x2d = x_tm.reshape(T * Bp, F)

    w_ih_t = jnp.transpose(w_ih).astype(jnp.float32)                # (F, 4H)
    w_hh_t = jnp.transpose(w_hh).astype(jnp.float32)                # (H, 4H)
    b = (b_ih + b_hh).reshape(1, 4 * H).astype(jnp.float32)         # (1, 4H)
    w_out_p = jnp.pad(jnp.transpose(w_out).astype(jnp.float32),
                      ((0, 0), (0, Op - O)))                        # (H, Op)
    b_out_p = jnp.pad(b_out.astype(jnp.float32),
                      (0, Op - O)).reshape(1, Op)                   # (1, Op)

    vmem = pl.BlockSpec(memory_space=pltpu.MemorySpace.VMEM)
    kernel = functools.partial(lstm_head_kernel, T=T, B=Bp)

    y2d = pl.pallas_call(
        kernel,
        out_shape=jax.ShapeDtypeStruct((T * Bp, Op), jnp.float32),
        in_specs=[vmem] * 6,
        out_specs=vmem,
        scratch_shapes=[pltpu.VMEM((T * Bp, 4 * H), jnp.float32),   # xw
                        pltpu.VMEM((T * Bp, H), jnp.float32)],      # h_seq
    )(x2d, w_ih_t, w_hh_t, b, w_out_p, b_out_p)

    y = y2d.reshape(T, Bp, Op)[:, :B, :O]                           # (T, B, O)
    return jnp.transpose(y, (1, 0, 2))                              # (B, T, O)


def _reference_forward(x, w_ih, w_hh, b_ih, b_hh, w_out, b_out):
    """Pure-JAX reference mirroring torch.nn.LSTM(batch_first) + Linear."""
    B, T, F = x.shape
    H = w_hh.shape[1]

    def cell(carry, x_t):
        h, c = carry
        gates = x_t @ w_ih.T + b_ih + h @ w_hh.T + b_hh
        i_g = jax.nn.sigmoid(gates[:, 0 * H:1 * H])
        f_g = jax.nn.sigmoid(gates[:, 1 * H:2 * H])
        g_g = jnp.tanh(gates[:, 2 * H:3 * H])
        o_g = jax.nn.sigmoid(gates[:, 3 * H:4 * H])
        c_new = f_g * c + i_g * g_g
        h_new = o_g * jnp.tanh(c_new)
        return (h_new, c_new), h_new

    h0 = jnp.zeros((B, H), jnp.float32)
    c0 = jnp.zeros((B, H), jnp.float32)
    _, hs = lax.scan(cell, (h0, c0), jnp.transpose(x, (1, 0, 2)))   # (T, B, H)
    hs = jnp.transpose(hs, (1, 0, 2))                               # (B, T, H)
    return hs @ w_out.T + b_out


if __name__ == "__main__":
    # Small shapes consistent with the module's forward:
    # x: (batch=2, seq=8, feature_size=16), lstm_size=32, out_size=5.
    B, T, F = 2, 8, 16
    H, O = 32, 5

    key = jax.random.PRNGKey(0)
    keys = jax.random.split(key, 7)
    k = 1.0 / jnp.sqrt(H)  # PyTorch-style uniform(-1/sqrt(H), 1/sqrt(H)) init

    x = jax.random.normal(keys[0], (B, T, F), dtype=jnp.float32)
    w_ih = jax.random.uniform(keys[1], (4 * H, F), minval=-k, maxval=k)
    w_hh = jax.random.uniform(keys[2], (4 * H, H), minval=-k, maxval=k)
    b_ih = jax.random.uniform(keys[3], (4 * H,), minval=-k, maxval=k)
    b_hh = jax.random.uniform(keys[4], (4 * H,), minval=-k, maxval=k)
    w_out = jax.random.uniform(keys[5], (O, H), minval=-k, maxval=k)
    b_out = jax.random.uniform(keys[6], (O,), minval=-k, maxval=k)

    y = lstm_head_forward(x, w_ih, w_hh, b_ih, b_hh, w_out, b_out)
    y = jax.block_until_ready(y)

    y_ref = _reference_forward(x, w_ih, w_hh, b_ih, b_hh, w_out, b_out)
    assert y.shape == (B, T, O)
    assert jnp.allclose(y, y_ref, atol=1e-5, rtol=1e-5), "mismatch vs reference"

    print("KERNEL_OK")
</pallas_src>

<mosaic_0001>
module attributes {stable_mosaic.version = 11 : i64} {
  func.func @lstm_head_kernel(%arg0: memref<64x16xf32, #tpu.memory_space<vmem>>, %arg1: memref<16x128xf32, #tpu.memory_space<vmem>>, %arg2: memref<32x128xf32, #tpu.memory_space<vmem>>, %arg3: memref<1x128xf32, #tpu.memory_space<vmem>>, %arg4: memref<32x128xf32, #tpu.memory_space<vmem>>, %arg5: memref<1x128xf32, #tpu.memory_space<vmem>>, %arg6: memref<64x128xf32, #tpu.memory_space<vmem>>, %arg7: memref<64x128xf32, #tpu.memory_space<vmem>>, %arg8: memref<64x32xf32, #tpu.memory_space<vmem>>) attributes {dimension_semantics = [], scalar_prefetch = 0 : i64, scratch_operands = 2 : i64, tpu.core_type = #tpu.core_type<tc>} {
    %c0 = arith.constant 0 : index
    %c0_0 = arith.constant 0 : index
    %0 = vector.load %arg0[%c0, %c0_0] : memref<64x16xf32, #tpu.memory_space<vmem>>, vector<64x16xf32>
    %c0_1 = arith.constant 0 : index
    %c0_2 = arith.constant 0 : index
    %1 = vector.load %arg1[%c0_1, %c0_2] : memref<16x128xf32, #tpu.memory_space<vmem>>, vector<16x128xf32>
    %cst = arith.constant dense<0.000000e+00> : vector<64x128xf32>
    %2 = tpu.matmul %0, %1, %cst {dimension_numbers = #tpu.dot_dimension_numbers<[1], [0], [0], [1], [0, 0, 1, 1], [], []>} : vector<64x16xf32>, vector<16x128xf32>, vector<64x128xf32> -> vector<64x128xf32>
    %c0_3 = arith.constant 0 : index
    %c0_4 = arith.constant 0 : index
    %3 = vector.load %arg3[%c0_3, %c0_4] : memref<1x128xf32, #tpu.memory_space<vmem>>, vector<1x128xf32>
    %4 = vector.broadcast %3 : vector<1x128xf32> to vector<64x128xf32>
    %5 = arith.addf %2, %4 : vector<64x128xf32>
    %c0_5 = arith.constant 0 : index
    %c0_6 = arith.constant 0 : index
    %6 = vector.load %arg7[%c0_5, %c0_6] : memref<64x128xf32, #tpu.memory_space<vmem>>, vector<64x128xf32>
    tpu.vector_store %arg7[%c0_5, %c0_6], %5 {strides = array<i32>} : memref<64x128xf32, #tpu.memory_space<vmem>>, vector<64x128xf32>,
    %c0_7 = arith.constant 0 : index
    %c0_8 = arith.constant 0 : index
    %7 = vector.load %arg2[%c0_7, %c0_8] : memref<32x128xf32, #tpu.memory_space<vmem>>, vector<32x128xf32>
    %cst_9 = arith.constant 0.000000e+00 : f32
    %8 = vector.broadcast %cst_9 : f32 to vector<8x32xf32>
    %cst_10 = arith.constant 0.000000e+00 : f32
    %9 = vector.broadcast %cst_10 : f32 to vector<8x32xf32>
    %c0_11 = arith.constant 0 : index
    %c0_12 = arith.constant 0 : index
    %10 = vector.load %arg7[%c0_11, %c0_12] : memref<64x128xf32, #tpu.memory_space<vmem>>, vector<8x128xf32>
    %cst_13 = arith.constant dense<0.000000e+00> : vector<8x128xf32>
    %11 = tpu.matmul %8, %7, %cst_13 {dimension_numbers = #tpu.dot_dimension_numbers<[1], [0], [0], [1], [0, 0, 1, 1], [], []>} : vector<8x32xf32>, vector<32x128xf32>, vector<8x128xf32> -> vector<8x128xf32>
    %12 = arith.addf %10, %11 : vector<8x128xf32>
    %13 = arith.negf %12 : vector<8x128xf32>
    %14 = math.exp %13 : vector<8x128xf32>
    %cst_14 = arith.constant 1.000000e+00 : f32
    %15 = vector.broadcast %cst_14 : f32 to vector<8x128xf32>
    %16 = arith.addf %15, %14 : vector<8x128xf32>
    %17 = arith.divf %15, %16 : vector<8x128xf32>
    %18 = vector.extract_strided_slice %17 {offsets = [0, 0], sizes = [8, 32], strides = [1, 1]} : vector<8x128xf32> to vector<8x32xf32>
    %19 = vector.extract_strided_slice %17 {offsets = [0, 32], sizes = [8, 32], strides = [1, 1]} : vector<8x128xf32> to vector<8x32xf32>
    %20 = vector.extract_strided_slice %17 {offsets = [0, 96], sizes = [8, 32], strides = [1, 1]} : vector<8x128xf32> to vector<8x32xf32>
    %21 = vector.extract_strided_slice %12 {offsets = [0, 64], sizes = [8, 32], strides = [1, 1]} : vector<8x128xf32> to vector<8x32xf32>
    %22 = math.tanh %21 : vector<8x32xf32>
    %23 = arith.mulf %19, %9 : vector<8x32xf32>
    %24 = arith.mulf %18, %22 : vector<8x32xf32>
    %25 = arith.addf %23, %24 : vector<8x32xf32>
    %26 = math.tanh %25 : vector<8x32xf32>
    %27 = arith.mulf %20, %26 : vector<8x32xf32>
    %c0_15 = arith.constant 0 : index
    %c0_16 = arith.constant 0 : index
    %28 = vector.load %arg8[%c0_15, %c0_16] : memref<64x32xf32, #tpu.memory_space<vmem>>, vector<8x32xf32>
    tpu.vector_store %arg8[%c0_15, %c0_16], %27 {strides = array<i32>} : memref<64x32xf32, #tpu.memory_space<vmem>>, vector<8x32xf32>,
    %c8 = arith.constant 8 : index
    %c0_17 = arith.constant 0 : index
    %29 = vector.load %arg7[%c8, %c0_17] : memref<64x128xf32, #tpu.memory_space<vmem>>, vector<8x128xf32>
    %cst_18 = arith.constant dense<0.000000e+00> : vector<8x128xf32>
    %30 = tpu.matmul %27, %7, %cst_18 {dimension_numbers = #tpu.dot_dimension_numbers<[1], [0], [0], [1], [0, 0, 1, 1], [], []>} : vector<8x32xf32>, vector<32x128xf32>, vector<8x128xf32> -> vector<8x128xf32>
    %31 = arith.addf %29, %30 : vector<8x128xf32>
    %32 = arith.negf %31 : vector<8x128xf32>
    %33 = math.exp %32 : vector<8x128xf32>
    %cst_19 = arith.constant 1.000000e+00 : f32
    %34 = vector.broadcast %cst_19 : f32 to vector<8x128xf32>
    %35 = arith.addf %34, %33 : vector<8x128xf32>
    %36 = arith.divf %34, %35 : vector<8x128xf32>
    %37 = vector.extract_strided_slice %36 {offsets = [0, 0], sizes = [8, 32], strides = [1, 1]} : vector<8x128xf32> to vector<8x32xf32>
    %38 = vector.extract_strided_slice %36 {offsets = [0, 32], sizes = [8, 32], strides = [1, 1]} : vector<8x128xf32> to vector<8x32xf32>
    %39 = vector.extract_strided_slice %36 {offsets = [0, 96], sizes = [8, 32], strides = [1, 1]} : vector<8x128xf32> to vector<8x32xf32>
    %40 = vector.extract_strided_slice %31 {offsets = [0, 64], sizes = [8, 32], strides = [1, 1]} : vector<8x128xf32> to vector<8x32xf32>
    %41 = math.tanh %40 : vector<8x32xf32>
    %42 = arith.mulf %38, %25 : vector<8x32xf32>
    %43 = arith.mulf %37, %41 : vector<8x32xf32>
    %44 = arith.addf %42, %43 : vector<8x32xf32>
    %45 = math.tanh %44 : vector<8x32xf32>
    %46 = arith.mulf %39, %45 : vector<8x32xf32>
    %c8_20 = arith.constant 8 : index
    %c0_21 = arith.constant 0 : index
    %47 = vector.load %arg8[%c8_20, %c0_21] : memref<64x32xf32, #tpu.memory_space<vmem>>, vector<8x32xf32>
    tpu.vector_store %arg8[%c8_20, %c0_21], %46 {strides = array<i32>} : memref<64x32xf32, #tpu.memory_space<vmem>>, vector<8x32xf32>,
    %c16 = arith.constant 16 : index
    %c0_22 = arith.constant 0 : index
    %48 = vector.load %arg7[%c16, %c0_22] : memref<64x128xf32, #tpu.memory_space<vmem>>, vector<8x128xf32>
    %cst_23 = arith.constant dense<0.000000e+00> : vector<8x128xf32>
    %49 = tpu.matmul %46, %7, %cst_23 {dimension_numbers = #tpu.dot_dimension_numbers<[1], [0], [0], [1], [0, 0, 1, 1], [], []>} : vector<8x32xf32>, vector<32x128xf32>, vector<8x128xf32> -> vector<8x128xf32>
    %50 = arith.addf %48, %49 : vector<8x128xf32>
    %51 = arith.negf %50 : vector<8x128xf32>
    %52 = math.exp %51 : vector<8x128xf32>
    %cst_24 = arith.constant 1.000000e+00 : f32
    %53 = vector.broadcast %cst_24 : f32 to vector<8x128xf32>
    %54 = arith.addf %53, %52 : vector<8x128xf32>
    %55 = arith.divf %53, %54 : vector<8x128xf32>
    %56 = vector.extract_strided_slice %55 {offsets = [0, 0], sizes = [8, 32], strides = [1, 1]} : vector<8x128xf32> to vector<8x32xf32>
    %57 = vector.extract_strided_slice %55 {offsets = [0, 32], sizes = [8, 32], strides = [1, 1]} : vector<8x128xf32> to vector<8x32xf32>
    %58 = vector.extract_strided_slice %55 {offsets = [0, 96], sizes = [8, 32], strides = [1, 1]} : vector<8x128xf32> to vector<8x32xf32>
    %59 = vector.extract_strided_slice %50 {offsets = [0, 64], sizes = [8, 32], strides = [1, 1]} : vector<8x128xf32> to vector<8x32xf32>
    %60 = math.tanh %59 : vector<8x32xf32>
    %61 = arith.mulf %57, %44 : vector<8x32xf32>
    %62 = arith.mulf %56, %60 : vector<8x32xf32>
    %63 = arith.addf %61, %62 : vector<8x32xf32>
    %64 = math.tanh %63 : vector<8x32xf32>
    %65 = arith.mulf %58, %64 : vector<8x32xf32>
    %c16_25 = arith.constant 16 : index
    %c0_26 = arith.constant 0 : index
    %66 = vector.load %arg8[%c16_25, %c0_26] : memref<64x32xf32, #tpu.memory_space<vmem>>, vector<8x32xf32>
    tpu.vector_store %arg8[%c16_25, %c0_26], %65 {strides = array<i32>} : memref<64x32xf32, #tpu.memory_space<vmem>>, vector<8x32xf32>,
    %c24 = arith.constant 24 : index
    %c0_27 = arith.constant 0 : index
    %67 = vector.load %arg7[%c24, %c0_27] : memref<64x128xf32, #tpu.memory_space<vmem>>, vector<8x128xf32>
    %cst_28 = arith.constant dense<0.000000e+00> : vector<8x128xf32>
    %68 = tpu.matmul %65, %7, %cst_28 {dimension_numbers = #tpu.dot_dimension_numbers<[1], [0], [0], [1], [0, 0, 1, 1], [], []>} : vector<8x32xf32>, vector<32x128xf32>, vector<8x128xf32> -> vector<8x128xf32>
    %69 = arith.addf %67, %68 : vector<8x128xf32>
    %70 = arith.negf %69 : vector<8x128xf32>
    %71 = math.exp %70 : vector<8x128xf32>
    %cst_29 = arith.constant 1.000000e+00 : f32
    %72 = vector.broadcast %cst_29 : f32 to vector<8x128xf32>
    %73 = arith.addf %72, %71 : vector<8x128xf32>
    %74 = arith.divf %72, %73 : vector<8x128xf32>
    %75 = vector.extract_strided_slice %74 {offsets = [0, 0], sizes = [8, 32], strides = [1, 1]} : vector<8x128xf32> to vector<8x32xf32>
    %76 = vector.extract_strided_slice %74 {offsets = [0, 32], sizes = [8, 32], strides = [1, 1]} : vector<8x128xf32> to vector<8x32xf32>
    %77 = vector.extract_strided_slice %74 {offsets = [0, 96], sizes = [8, 32], strides = [1, 1]} : vector<8x128xf32> to vector<8x32xf32>
    %78 = vector.extract_strided_slice %69 {offsets = [0, 64], sizes = [8, 32], strides = [1, 1]} : vector<8x128xf32> to vector<8x32xf32>
    %79 = math.tanh %78 : vector<8x32xf32>
    %80 = arith.mulf %76, %63 : vector<8x32xf32>
    %81 = arith.mulf %75, %79 : vector<8x32xf32>
    %82 = arith.addf %80, %81 : vector<8x32xf32>
    %83 = math.tanh %82 : vector<8x32xf32>
    %84 = arith.mulf %77, %83 : vector<8x32xf32>
    %c24_30 = arith.constant 24 : index
    %c0_31 = arith.constant 0 : index
    %85 = vector.load %arg8[%c24_30, %c0_31] : memref<64x32xf32, #tpu.memory_space<vmem>>, vector<8x32xf32>
    tpu.vector_store %arg8[%c24_30, %c0_31], %84 {strides = array<i32>} : memref<64x32xf32, #tpu.memory_space<vmem>>, vector<8x32xf32>,
    %c32 = arith.constant 32 : index
    %c0_32 = arith.constant 0 : index
    %86 = vector.load %arg7[%c32, %c0_32] : memref<64x128xf32, #tpu.memory_space<vmem>>, vector<8x128xf32>
    %cst_33 = arith.constant dense<0.000000e+00> : vector<8x128xf32>
    %87 = tpu.matmul %84, %7, %cst_33 {dimension_numbers = #tpu.dot_dimension_numbers<[1], [0], [0], [1], [0, 0, 1, 1], [], []>} : vector<8x32xf32>, vector<32x128xf32>, vector<8x128xf32> -> vector<8x128xf32>
    %88 = arith.addf %86, %87 : vector<8x128xf32>
    %89 = arith.negf %88 : vector<8x128xf32>
    %90 = math.exp %89 : vector<8x128xf32>
    %cst_34 = arith.constant 1.000000e+00 : f32
    %91 = vector.broadcast %cst_34 : f32 to vector<8x128xf32>
    %92 = arith.addf %91, %90 : vector<8x128xf32>
    %93 = arith.divf %91, %92 : vector<8x128xf32>
    %94 = vector.extract_strided_slice %93 {offsets = [0, 0], sizes = [8, 32], strides = [1, 1]} : vector<8x128xf32> to vector<8x32xf32>
    %95 = vector.extract_strided_slice %93 {offsets = [0, 32], sizes = [8, 32], strides = [1, 1]} : vector<8x128xf32> to vector<8x32xf32>
    %96 = vector.extract_strided_slice %93 {offsets = [0, 96], sizes = [8, 32], strides = [1, 1]} : vector<8x128xf32> to vector<8x32xf32>
    %97 = vector.extract_strided_slice %88 {offsets = [0, 64], sizes = [8, 32], strides = [1, 1]} : vector<8x128xf32> to vector<8x32xf32>
    %98 = math.tanh %97 : vector<8x32xf32>
    %99 = arith.mulf %95, %82 : vector<8x32xf32>
    %100 = arith.mulf %94, %98 : vector<8x32xf32>
    %101 = arith.addf %99, %100 : vector<8x32xf32>
    %102 = math.tanh %101 : vector<8x32xf32>
    %103 = arith.mulf %96, %102 : vector<8x32xf32>
    %c32_35 = arith.constant 32 : index
    %c0_36 = arith.constant 0 : index
    %104 = vector.load %arg8[%c32_35, %c0_36] : memref<64x32xf32, #tpu.memory_space<vmem>>, vector<8x32xf32>
    tpu.vector_store %arg8[%c32_35, %c0_36], %103 {strides = array<i32>} : memref<64x32xf32, #tpu.memory_space<vmem>>, vector<8x32xf32>,
    %c40 = arith.constant 40 : index
    %c0_37 = arith.constant 0 : index
    %105 = vector.load %arg7[%c40, %c0_37] : memref<64x128xf32, #tpu.memory_space<vmem>>, vector<8x128xf32>
    %cst_38 = arith.constant dense<0.000000e+00> : vector<8x128xf32>
    %106 = tpu.matmul %103, %7, %cst_38 {dimension_numbers = #tpu.dot_dimension_numbers<[1], [0], [0], [1], [0, 0, 1, 1], [], []>} : vector<8x32xf32>, vector<32x128xf32>, vector<8x128xf32> -> vector<8x128xf32>
    %107 = arith.addf %105, %106 : vector<8x128xf32>
    %108 = arith.negf %107 : vector<8x128xf32>
    %109 = math.exp %108 : vector<8x128xf32>
    %cst_39 = arith.constant 1.000000e+00 : f32
    %110 = vector.broadcast %cst_39 : f32 to vector<8x128xf32>
    %111 = arith.addf %110, %109 : vector<8x128xf32>
    %112 = arith.divf %110, %111 : vector<8x128xf32>
    %113 = vector.extract_strided_slice %112 {offsets = [0, 0], sizes = [8, 32], strides = [1, 1]} : vector<8x128xf32> to vector<8x32xf32>
    %114 = vector.extract_strided_slice %112 {offsets = [0, 32], sizes = [8, 32], strides = [1, 1]} : vector<8x128xf32> to vector<8x32xf32>
    %115 = vector.extract_strided_slice %112 {offsets = [0, 96], sizes = [8, 32], strides = [1, 1]} : vector<8x128xf32> to vector<8x32xf32>
    %116 = vector.extract_strided_slice %107 {offsets = [0, 64], sizes = [8, 32], strides = [1, 1]} : vector<8x128xf32> to vector<8x32xf32>
    %117 = math.tanh %116 : vector<8x32xf32>
    %118 = arith.mulf %114, %101 : vector<8x32xf32>
    %119 = arith.mulf %113, %117 : vector<8x32xf32>
    %120 = arith.addf %118, %119 : vector<8x32xf32>
    %121 = math.tanh %120 : vector<8x32xf32>
    %122 = arith.mulf %115, %121 : vector<8x32xf32>
    %c40_40 = arith.constant 40 : index
    %c0_41 = arith.constant 0 : index
    %123 = vector.load %arg8[%c40_40, %c0_41] : memref<64x32xf32, #tpu.memory_space<vmem>>, vector<8x32xf32>
    tpu.vector_store %arg8[%c40_40, %c0_41], %122 {strides = array<i32>} : memref<64x32xf32, #tpu.memory_space<vmem>>, vector<8x32xf32>,
    %c48 = arith.constant 48 : index
    %c0_42 = arith.constant 0 : index
    %124 = vector.load %arg7[%c48, %c0_42] : memref<64x128xf32, #tpu.memory_space<vmem>>, vector<8x128xf32>
    %cst_43 = arith.constant dense<0.000000e+00> : vector<8x128xf32>
    %125 = tpu.matmul %122, %7, %cst_43 {dimension_numbers = #tpu.dot_dimension_numbers<[1], [0], [0], [1], [0, 0, 1, 1], [], []>} : vector<8x32xf32>, vector<32x128xf32>, vector<8x128xf32> -> vector<8x128xf32>
    %126 = arith.addf %124, %125 : vector<8x128xf32>
    %127 = arith.negf %126 : vector<8x128xf32>
    %128 = math.exp %127 : vector<8x128xf32>
    %cst_44 = arith.constant 1.000000e+00 : f32
    %129 = vector.broadcast %cst_44 : f32 to vector<8x128xf32>
    %130 = arith.addf %129, %128 : vector<8x128xf32>
    %131 = arith.divf %129, %130 : vector<8x128xf32>
    %132 = vector.extract_strided_slice %131 {offsets = [0, 0], sizes = [8, 32], strides = [1, 1]} : vector<8x128xf32> to vector<8x32xf32>
    %133 = vector.extract_strided_slice %131 {offsets = [0, 32], sizes = [8, 32], strides = [1, 1]} : vector<8x128xf32> to vector<8x32xf32>
    %134 = vector.extract_strided_slice %131 {offsets = [0, 96], sizes = [8, 32], strides = [1, 1]} : vector<8x128xf32> to vector<8x32xf32>
    %135 = vector.extract_strided_slice %126 {offsets = [0, 64], sizes = [8, 32], strides = [1, 1]} : vector<8x128xf32> to vector<8x32xf32>
    %136 = math.tanh %135 : vector<8x32xf32>
    %137 = arith.mulf %133, %120 : vector<8x32xf32>
    %138 = arith.mulf %132, %136 : vector<8x32xf32>
    %139 = arith.addf %137, %138 : vector<8x32xf32>
    %140 = math.tanh %139 : vector<8x32xf32>
    %141 = arith.mulf %134, %140 : vector<8x32xf32>
    %c48_45 = arith.constant 48 : index
    %c0_46 = arith.constant 0 : index
    %142 = vector.load %arg8[%c48_45, %c0_46] : memref<64x32xf32, #tpu.memory_space<vmem>>, vector<8x32xf32>
    tpu.vector_store %arg8[%c48_45, %c0_46], %141 {strides = array<i32>} : memref<64x32xf32, #tpu.memory_space<vmem>>, vector<8x32xf32>,
    %c56 = arith.constant 56 : index
    %c0_47 = arith.constant 0 : index
    %143 = vector.load %arg7[%c56, %c0_47] : memref<64x128xf32, #tpu.memory_space<vmem>>, vector<8x128xf32>
    %cst_48 = arith.constant dense<0.000000e+00> : vector<8x128xf32>
    %144 = tpu.matmul %141, %7, %cst_48 {dimension_numbers = #tpu.dot_dimension_numbers<[1], [0], [0], [1], [0, 0, 1, 1], [], []>} : vector<8x32xf32>, vector<32x128xf32>, vector<8x128xf32> -> vector<8x128xf32>
    %145 = arith.addf %143, %144 : vector<8x128xf32>
    %146 = arith.negf %145 : vector<8x128xf32>
    %147 = math.exp %146 : vector<8x128xf32>
    %cst_49 = arith.constant 1.000000e+00 : f32
    %148 = vector.broadcast %cst_49 : f32 to vector<8x128xf32>
    %149 = arith.addf %148, %147 : vector<8x128xf32>
    %150 = arith.divf %148, %149 : vector<8x128xf32>
    %151 = vector.extract_strided_slice %150 {offsets = [0, 0], sizes = [8, 32], strides = [1, 1]} : vector<8x128xf32> to vector<8x32xf32>
    %152 = vector.extract_strided_slice %150 {offsets = [0, 32], sizes = [8, 32], strides = [1, 1]} : vector<8x128xf32> to vector<8x32xf32>
    %153 = vector.extract_strided_slice %150 {offsets = [0, 96], sizes = [8, 32], strides = [1, 1]} : vector<8x128xf32> to vector<8x32xf32>
    %154 = vector.extract_strided_slice %145 {offsets = [0, 64], sizes = [8, 32], strides = [1, 1]} : vector<8x128xf32> to vector<8x32xf32>
    %155 = math.tanh %154 : vector<8x32xf32>
    %156 = arith.mulf %152, %139 : vector<8x32xf32>
    %157 = arith.mulf %151, %155 : vector<8x32xf32>
    %158 = arith.addf %156, %157 : vector<8x32xf32>
    %159 = math.tanh %158 : vector<8x32xf32>
    %160 = arith.mulf %153, %159 : vector<8x32xf32>
    %c56_50 = arith.constant 56 : index
    %c0_51 = arith.constant 0 : index
    %161 = vector.load %arg8[%c56_50, %c0_51] : memref<64x32xf32, #tpu.memory_space<vmem>>, vector<8x32xf32>
    tpu.vector_store %arg8[%c56_50, %c0_51], %160 {strides = array<i32>} : memref<64x32xf32, #tpu.memory_space<vmem>>, vector<8x32xf32>,
    %c0_52 = arith.constant 0 : index
    %c0_53 = arith.constant 0 : index
    %162 = vector.load %arg8[%c0_52, %c0_53] : memref<64x32xf32, #tpu.memory_space<vmem>>, vector<64x32xf32>
    %c0_54 = arith.constant 0 : index
    %c0_55 = arith.constant 0 : index
    %163 = vector.load %arg4[%c0_54, %c0_55] : memref<32x128xf32, #tpu.memory_space<vmem>>, vector<32x128xf32>
    %cst_56 = arith.constant dense<0.000000e+00> : vector<64x128xf32>
    %164 = tpu.matmul %162, %163, %cst_56 {dimension_numbers = #tpu.dot_dimension_numbers<[1], [0], [0], [1], [0, 0, 1, 1], [], []>} : vector<64x32xf32>, vector<32x128xf32>, vector<64x128xf32> -> vector<64x128xf32>
    %c0_57 = arith.constant 0 : index
    %c0_58 = arith.constant 0 : index
    %165 = vector.load %arg5[%c0_57, %c0_58] : memref<1x128xf32, #tpu.memory_space<vmem>>, vector<1x128xf32>
    %166 = vector.broadcast %165 : vector<1x128xf32> to vector<64x128xf32>
    %167 = arith.addf %164, %166 : vector<64x128xf32>
    %c0_59 = arith.constant 0 : index
    %c0_60 = arith.constant 0 : index
    %168 = vector.load %arg6[%c0_59, %c0_60] : memref<64x128xf32, #tpu.memory_space<vmem>>, vector<64x128xf32>
    tpu.vector_store %arg6[%c0_59, %c0_60], %167 {strides = array<i32>} : memref<64x128xf32, #tpu.memory_space<vmem>>, vector<64x128xf32>,
    return
  }
}

</mosaic_0001>

<llo_original>
// kernel: lstm_head_forward.1
$region0: #{lstm_head_forward.1}
  #allocation0 [shape = 'u32[]', space=smem, size = 0x4, offset = 0x4, fixed_abs, tag = 'smem constant byte address 0x4 - core index']
  #allocation1 [shape = 'u32[144,128]{1,0:T(1,128)}', space=vmem, size = 0x12000, scoped, tag = 'internal scratch']
  #allocation2 [shape = 'f32[64,128]{1,0:T(8,128)}', space=vmem, size = 0x8000, scoped, tag = 'scratch operand']
  #allocation3 [shape = 'f32[64,32]{1,0:T(8,128)}', space=vmem, size = 0x8000, scoped, tag = 'scratch operand']
  %s0 = inlined_call_operand.vmem [shape: f32[64,16], index: 0, kind: input, shape index: {}]
  %s1 = inlined_call_operand.vmem [shape: f32[16,128], index: 1, kind: input, shape index: {}]
  %s2 = inlined_call_operand.vmem [shape: f32[32,128], index: 2, kind: input, shape index: {}]
  %s3 = inlined_call_operand.vmem [shape: f32[1,128], index: 3, kind: input, shape index: {}]
  %s4 = inlined_call_operand.vmem [shape: f32[32,128], index: 4, kind: input, shape index: {}]
  %s5 = inlined_call_operand.vmem [shape: f32[1,128], index: 5, kind: input, shape index: {}]
  %s6 = inlined_call_operand.vmem [shape: f32[64,128], index: 6, kind: output, shape index: {}]
  %s7 = sld [smem:[#allocation0]]
  $region34: #{lstm_head_forward.1} parent=0
    _
  %s9 = ssub.s32 1, %s7
  %s10 = scalar_select 0, %s9, %s7
  // Predicated region
  $region2: #{lstm_head_forward.1} parent=0 // pred_check
    _
  $region3: #{lstm_head_forward.1} parent=0 // pred_check_branch
    %12 = sbr.rel (0) target = $region5
  $region4: #{lstm_head_forward.1} parent=0 // pred_region
    _
  $region5: #{lstm_head_forward.1} parent=0 // pred_fallthru
    _
  // Predicated region
  $region6: #{lstm_head_forward.1} parent=0 // pred_check
    _
  $region7: #{lstm_head_forward.1} parent=0 // pred_check_branch
    %14 = sbr.rel (0) target = $region9
  $region8: #{lstm_head_forward.1} parent=0 // pred_region
    _
  $region9: #{lstm_head_forward.1} parent=0 // pred_fallthru
    _
  // Predicated region
  $region10: #{lstm_head_forward.1} parent=0 // pred_check
    _
  $region11: #{lstm_head_forward.1} parent=0 // pred_check_branch
    %16 = sbr.rel (0) target = $region13
  $region12: #{lstm_head_forward.1} parent=0 // pred_region
    _
  $region13: #{lstm_head_forward.1} parent=0 // pred_fallthru
    _
  // Predicated region
  $region14: #{lstm_head_forward.1} parent=0 // pred_check
    _
  $region15: #{lstm_head_forward.1} parent=0 // pred_check_branch
    %18 = sbr.rel (0) target = $region17
  $region16: #{lstm_head_forward.1} parent=0 // pred_region
    _
  $region17: #{lstm_head_forward.1} parent=0 // pred_fallthru
    _
  // Predicated region
  $region18: #{lstm_head_forward.1} parent=0 // pred_check
    _
  $region19: #{lstm_head_forward.1} parent=0 // pred_check_branch
    %20 = sbr.rel (0) target = $region21
  $region20: #{lstm_head_forward.1} parent=0 // pred_region
    _
  $region21: #{lstm_head_forward.1} parent=0 // pred_fallthru
    _
  // Predicated region
  $region22: #{lstm_head_forward.1} parent=0 // pred_check
    _
  $region23: #{lstm_head_forward.1} parent=0 // pred_check_branch
    %22 = sbr.rel (0) target = $region25
  $region24: #{lstm_head_forward.1} parent=0 // pred_region
    _
  $region25: #{lstm_head_forward.1} parent=0 // pred_fallthru
    _
  %v23 = vld [vmem:[%s0] sm:$0xff]
  %v24 = vld [vmem:[%s0 + $0x8] sm:$0xff]
  %v25 = vld [vmem:[%s0 + $0x10] sm:$0xff]
  %v26 = vld [vmem:[%s0 + $0x18] sm:$0xff]
  %v27 = vld [vmem:[%s0 + $0x20] sm:$0xff]
  %v28 = vld [vmem:[%s0 + $0x28] sm:$0xff]
  %v29 = vld [vmem:[%s0 + $0x30] sm:$0xff]
  %v30 = vld [vmem:[%s0 + $0x38] sm:$0xff]
  %v31 = vld [vmem:[%s1] sm:$0xff]
  %v32 = vld [vmem:[%s1 + $0x8] sm:$0xff]
  %v33 = vld [vmem:[%s3] sm:$0x1]
  %v35 = vlaneseq
  %v36 = vshrl.u32 %v35, 7
  %v37 = vsub.s32 0, %v36
  %v38 = vrot.slane %v33, %v37
  %vm40 = vcmask 130048
  %v42 = vsel %vm40, %v23, 0
  %v45 = vsel %vm40, %v24, 0
  %v48 = vsel %vm40, %v25, 0
  %v51 = vsel %vm40, %v26, 0
  %v54 = vsel %vm40, %v27, 0
  %v57 = vsel %vm40, %v28, 0
  %v60 = vsel %vm40, %v29, 0
  %v63 = vsel %vm40, %v30, 0
  %65 = vmatprep.subr.mxu0 0.0
  %66 = vmatpush1.msra.mxu0 %v31
  %67 = vmatprep.subr.mxu0 0.0
  %68 = vmatpush1.msra.mxu0 %v32
  %69 = vmatprep.subr.mxu0 0.0
  %70 = vmatpush1.msra.mxu0 0.0
  %71 = vmatprep.subr.mxu0 0.0
  %72 = vmatpush1.msra.mxu0 0.0
  %73 = vmatprep.subr.mxu0 0.0
  %74 = vmatpush1.msra.mxu0 0.0
  %75 = vmatprep.subr.mxu0 0.0
  %76 = vmatpush1.msra.mxu0 0.0
  %77 = vmatprep.subr.mxu0 0.0
  %78 = vmatpush1.msra.mxu0 0.0
  %79 = vmatprep.subr.mxu0 0.0
  %80 = vmatpush1.msra.mxu0 0.0
  %81 = vmatprep.subr.mxu0 0.0
  %82 = vmatpush1.msra.mxu0 0.0
  %83 = vmatprep.subr.mxu0 0.0
  %84 = vmatpush1.msra.mxu0 0.0
  %85 = vmatprep.subr.mxu0 0.0
  %86 = vmatpush1.msra.mxu0 0.0
  %87 = vmatprep.subr.mxu0 0.0
  %88 = vmatpush1.msra.mxu0 0.0
  %89 = vmatprep.subr.mxu0 0.0
  %90 = vmatpush1.msra.mxu0 0.0
  %91 = vmatprep.subr.mxu0 0.0
  %92 = vmatpush1.msra.mxu0 0.0
  %93 = vmatprep.subr.mxu0 0.0
  %94 = vmatpush1.msra.mxu0 0.0
  %95 = vmatprep.subr.mxu0 0.0
  %96 = vmatpush1.msra.mxu0 0.0
  %97 = vmatprep.subr.mxu0 0.0
  %98 = vmatpush1.msra.mxu0 0.0
  %99 = vmatprep.subr.mxu0 0.0
  %100 = vmatpush1.msra.mxu0 0.0
  %101 = vmatprep.subr.mxu0 0.0
  %102 = vmatpush1.msra.mxu0 0.0
  %103 = vmatprep.subr.mxu0 0.0
  %104 = vmatpush1.msra.mxu0 0.0
  %105 = vmatprep.subr.mxu0 0.0
  %106 = vmatpush1.msra.mxu0 0.0
  %107 = vmatprep.subr.mxu0 0.0
  %108 = vmatpush1.msra.mxu0 0.0
  %109 = vmatprep.subr.mxu0 0.0
  %110 = vmatpush1.msra.mxu0 0.0
  %111 = vmatprep.subr.mxu0 0.0
  %112 = vmatpush1.msra.mxu0 0.0
  %113 = vmatprep.subr.mxu0 0.0
  %114 = vmatpush1.msra.mxu0 0.0
  %115 = vmatprep.subr.mxu0 0.0
  %116 = vmatpush1.msra.mxu0 0.0
  %117 = vmatprep.subr.mxu0 0.0
  %118 = vmatpush1.msra.mxu0 0.0
  %119 = vmatprep.subr.mxu0 0.0
  %120 = vmatpush1.msra.mxu0 0.0
  %121 = vmatprep.subr.mxu0 0.0
  %122 = vmatpush1.msra.mxu0 0.0
  %123 = vmatprep.subr.mxu0 0.0
  %124 = vmatpush1.msra.mxu0 0.0
  %125 = vmatprep.subr.mxu0 0.0
  %126 = vmatpush1.msra.mxu0 0.0
  %127 = vmatprep.subr.mxu0 0.0
  %128 = vmatpush1.msra.mxu0 0.0
  %129 = vmatprep.mubr.f32.mxu0 0.0
  %130 = vmatmul.mubr.f32.gmra.mrb[0].mxu0 %v42
  %v131 = vpop.f32.mrb[0].mxu0
  %v132 = vadd.f32 %v38, %v131
  %v133 = vpop.f32.mrb[0].mxu0
  %134 = vmatprep.mubr.f32.mxu0 0.0
  %135 = vmatmul.mubr.f32.gmra.mrb[0].mxu0 %v45
  %v136 = vpop.f32.mrb[0].mxu0
  %v137 = vadd.f32 %v38, %v136
  %v138 = vpop.f32.mrb[0].mxu0
  %139 = vmatprep.mubr.f32.mxu0 0.0
  %140 = vmatmul.mubr.f32.gmra.mrb[0].mxu0 %v48
  %v141 = vpop.f32.mrb[0].mxu0
  %v142 = vadd.f32 %v38, %v141
  %v143 = vpop.f32.mrb[0].mxu0
  %144 = vmatprep.mubr.f32.mxu0 0.0
  %145 = vmatmul.mubr.f32.gmra.mrb[0].mxu0 %v51
  %v146 = vpop.f32.mrb[0].mxu0
  %v147 = vadd.f32 %v38, %v146
  %v148 = vpop.f32.mrb[0].mxu0
  %149 = vmatprep.mubr.f32.mxu0 0.0
  %150 = vmatmul.mubr.f32.gmra.mrb[0].mxu0 %v54
  %v151 = vpop.f32.mrb[0].mxu0
  %v152 = vadd.f32 %v38, %v151
  %v153 = vpop.f32.mrb[0].mxu0
  %154 = vmatprep.mubr.f32.mxu0 0.0
  %155 = vmatmul.mubr.f32.gmra.mrb[0].mxu0 %v57
  %v156 = vpop.f32.mrb[0].mxu0
  %v157 = vadd.f32 %v38, %v156
  %v158 = vpop.f32.mrb[0].mxu0
  %159 = vmatprep.mubr.f32.mxu0 0.0
  %160 = vmatmul.mubr.f32.gmra.mrb[0].mxu0 %v60
  %v161 = vpop.f32.mrb[0].mxu0
  %v162 = vadd.f32 %v38, %v161
  %v163 = vpop.f32.mrb[0].mxu0
  %164 = vmatprep.mubr.f32.mxu0 0.0
  %165 = vmatmul.mubr.f32.gmra.mrb[0].mxu0 %v63
  %v166 = vpop.f32.mrb[0].mxu0
  %v167 = vadd.f32 %v38, %v166
  %v168 = vpop.f32.mrb[0].mxu0
  %169 = vdwg.mxu0
  %170 = vst [vmem:[#allocation2] sm:$0xff] %v132
  %171 = vst [vmem:[#allocation2 + $0x8] sm:$0xff] %v137
  %172 = vst [vmem:[#allocation2 + $0x10] sm:$0xff] %v142
  %173 = vst [vmem:[#allocation2 + $0x18] sm:$0xff] %v147
  %174 = vst [vmem:[#allocation2 + $0x20] sm:$0xff] %v152
  %175 = vst [vmem:[#allocation2 + $0x28] sm:$0xff] %v157
  %176 = vst [vmem:[#allocation2 + $0x30] sm:$0xff] %v162
  %177 = vst [vmem:[#allocation2 + $0x38] sm:$0xff] %v167
  %v178 = vld [vmem:[%s2] sm:$0xff]
  %v179 = vld [vmem:[%s2 + $0x8] sm:$0xff]
  %v180 = vld [vmem:[%s2 + $0x10] sm:$0xff]
  %v181 = vld [vmem:[%s2 + $0x18] sm:$0xff]
  %v182 = vld [vmem:[#allocation2] sm:$0xff]
  %vm183 = vcmask 261120
  %v185 = vsel %vm183, 0.0, 0
  %187 = vmatprep.subr.mxu0 0.0
  %188 = vmatpush1.msra.mxu0 %v178
  %189 = vmatprep.subr.mxu0 0.0
  %190 = vmatpush1.msra.mxu0 %v179
  %191 = vmatprep.subr.mxu0 0.0
  %192 = vmatpush1.msra.mxu0 %v180
  %193 = vmatprep.subr.mxu0 0.0
  %194 = vmatpush1.msra.mxu0 %v181
  %195 = vmatprep.subr.mxu0 0.0
  %196 = vmatpush1.msra.mxu0 0.0
  %197 = vmatprep.subr.mxu0 0.0
  %198 = vmatpush1.msra.mxu0 0.0
  %199 = vmatprep.subr.mxu0 0.0
  %200 = vmatpush1.msra.mxu0 0.0
  %201 = vmatprep.subr.mxu0 0.0
  %202 = vmatpush1.msra.mxu0 0.0
  %203 = vmatprep.subr.mxu0 0.0
  %204 = vmatpush1.msra.mxu0 0.0
  %205 = vmatprep.subr.mxu0 0.0
  %206 = vmatpush1.msra.mxu0 0.0
  %207 = vmatprep.subr.mxu0 0.0
  %208 = vmatpush1.msra.mxu0 0.0
  %209 = vmatprep.subr.mxu0 0.0
  %210 = vmatpush1.msra.mxu0 0.0
  %211 = vmatprep.subr.mxu0 0.0
  %212 = vmatpush1.msra.mxu0 0.0
  %213 = vmatprep.subr.mxu0 0.0
  %214 = vmatpush1.msra.mxu0 0.0
  %215 = vmatprep.subr.mxu0 0.0
  %216 = vmatpush1.msra.mxu0 0.0
  %217 = vmatprep.subr.mxu0 0.0
  %218 = vmatpush1.msra.mxu0 0.0
  %219 = vmatprep.subr.mxu0 0.0
  %220 = vmatpush1.msra.mxu0 0.0
  %221 = vmatprep.subr.mxu0 0.0
  %222 = vmatpush1.msra.mxu0 0.0
  %223 = vmatprep.subr.mxu0 0.0
  %224 = vmatpush1.msra.mxu0 0.0
  %225 = vmatprep.subr.mxu0 0.0
  %226 = vmatpush1.msra.mxu0 0.0
  %227 = vmatprep.subr.mxu0 0.0
  %228 = vmatpush1.msra.mxu0 0.0
  %229 = vmatprep.subr.mxu0 0.0
  %230 = vmatpush1.msra.mxu0 0.0
  %231 = vmatprep.subr.mxu0 0.0
  %232 = vmatpush1.msra.mxu0 0.0
  %233 = vmatprep.subr.mxu0 0.0
  %234 = vmatpush1.msra.mxu0 0.0
  %235 = vmatprep.subr.mxu0 0.0
  %236 = vmatpush1.msra.mxu0 0.0
  %237 = vmatprep.subr.mxu0 0.0
  %238 = vmatpush1.msra.mxu0 0.0
  %239 = vmatprep.subr.mxu0 0.0
  %240 = vmatpush1.msra.mxu0 0.0
  %241 = vmatprep.subr.mxu0 0.0
  %242 = vmatpush1.msra.mxu0 0.0
  %243 = vmatprep.subr.mxu0 0.0
  %244 = vmatpush1.msra.mxu0 0.0
  %245 = vmatprep.subr.mxu0 0.0
  %246 = vmatpush1.msra.mxu0 0.0
  %247 = vmatprep.subr.mxu0 0.0
  %248 = vmatpush1.msra.mxu0 0.0
  %249 = vmatprep.subr.mxu0 0.0
  %250 = vmatpush1.msra.mxu0 0.0
  %251 = vmatprep.mubr.f32.mxu0 0.0
  %252 = vmatmul.mubr.f32.gmra.mrb[0].mxu0 %v185
  %v253 = vpop.f32.mrb[0].mxu0
  %v254 = vadd.f32 0.0, %v253
  %v255 = vpop.f32.mrb[0].mxu0
  %256 = vdwg.mxu0
  %v257 = vadd.f32 %v182, %v254
  %v258 = vxor.u32 %v257, 2147483648
  %v259 = vmul.f32 %v258, 1.442695
  %v260 = vpow.pop %v259
  %v261 = vadd.f32 %v260, 1.0
  %v262 = vrcp.pop %v261
  %v263 = vmul.f32 1.0, %v262
  %v264 = vtanh.pop %v257
  %v265 = vmul.f32 %v263, 0.0
  %267 = vrot.lane.b32.xlu0 %v264, 64
  %v268 = vpop.permute.xlu0 %267
  %v270 = vmul.f32 %v263, %v268
  %272 = vrot.lane.b32.xlu0 %v270, 32
  %v273 = vpop.permute.xlu0 %272
  %v275 = vadd.f32 %v265, %v273
  %v276 = vtanh.pop %v275
  %278 = vrot.lane.b32.xlu0 %v276, 64
  %v279 = vpop.permute.xlu0 %278
  %v281 = vmul.f32 %v263, %v279
  %283 = vrot.lane.b32.xlu0 %v281, 32
  %v284 = vpop.permute.xlu0 %283
  %286 = vst.msk [vmem:[#allocation3] sm:$0xff] %vm183, %v284
  %v287 = vld [vmem:[#allocation2 + $0x8] sm:$0xff]
  %v288 = vsel %vm183, %v284, 0
  %290 = vmatprep.subr.mxu0 0.0
  %291 = vmatpush1.msra.mxu0 %v178
  %292 = vmatprep.subr.mxu0 0.0
  %293 = vmatpush1.msra.mxu0 %v179
  %294 = vmatprep.subr.mxu0 0.0
  %295 = vmatpush1.msra.mxu0 %v180
  %296 = vmatprep.subr.mxu0 0.0
  %297 = vmatpush1.msra.mxu0 %v181
  %298 = vmatprep.subr.mxu0 0.0
  %299 = vmatpush1.msra.mxu0 0.0
  %300 = vmatprep.subr.mxu0 0.0
  %301 = vmatpush1.msra.mxu0 0.0
  %302 = vmatprep.subr.mxu0 0.0
  %303 = vmatpush1.msra.mxu0 0.0
  %304 = vmatprep.subr.mxu0 0.0
  %305 = vmatpush1.msra.mxu0 0.0
  %306 = vmatprep.subr.mxu0 0.0
  %307 = vmatpush1.msra.mxu0 0.0
  %308 = vmatprep.subr.mxu0 0.0
  %309 = vmatpush1.msra.mxu0 0.0
  %310 = vmatprep.subr.mxu0 0.0
  %311 = vmatpush1.msra.mxu0 0.0
  %312 = vmatprep.subr.mxu0 0.0
  %313 = vmatpush1.msra.mxu0 0.0
  %314 = vmatprep.subr.mxu0 0.0
  %315 = vmatpush1.msra.mxu0 0.0
  %316 = vmatprep.subr.mxu0 0.0
  %317 = vmatpush1.msra.mxu0 0.0
  %318 = vmatprep.subr.mxu0 0.0
  %319 = vmatpush1.msra.mxu0 0.0
  %320 = vmatprep.subr.mxu0 0.0
  %321 = vmatpush1.msra.mxu0 0.0
  %322 = vmatprep.subr.mxu0 0.0
  %323 = vmatpush1.msra.mxu0 0.0
  %324 = vmatprep.subr.mxu0 0.0
  %325 = vmatpush1.msra.mxu0 0.0
  %326 = vmatprep.subr.mxu0 0.0
  %327 = vmatpush1.msra.mxu0 0.0
  %328 = vmatprep.subr.mxu0 0.0
  %329 = vmatpush1.msra.mxu0 0.0
  %330 = vmatprep.subr.mxu0 0.0
  %331 = vmatpush1.msra.mxu0 0.0
  %332 = vmatprep.subr.mxu0 0.0
  %333 = vmatpush1.msra.mxu0 0.0
  %334 = vmatprep.subr.mxu0 0.0
  %335 = vmatpush1.msra.mxu0 0.0
  %336 = vmatprep.subr.mxu0 0.0
  %337 = vmatpush1.msra.mxu0 0.0
  %338 = vmatprep.subr.mxu0 0.0
  %339 = vmatpush1.msra.mxu0 0.0
  %340 = vmatprep.subr.mxu0 0.0
  %341 = vmatpush1.msra.mxu0 0.0
  %342 = vmatprep.subr.mxu0 0.0
  %343 = vmatpush1.msra.mxu0 0.0
  %344 = vmatprep.subr.mxu0 0.0
  %345 = vmatpush1.msra.mxu0 0.0
  %346 = vmatprep.subr.mxu0 0.0
  %347 = vmatpush1.msra.mxu0 0.0
  %348 = vmatprep.subr.mxu0 0.0
  %349 = vmatpush1.msra.mxu0 0.0
  %350 = vmatprep.subr.mxu0 0.0
  %351 = vmatpush1.msra.mxu0 0.0
  %352 = vmatprep.subr.mxu0 0.0
  %353 = vmatpush1.msra.mxu0 0.0
  %354 = vmatprep.mubr.f32.mxu0 0.0
  %355 = vmatmul.mubr.f32.gmra.mrb[0].mxu0 %v288
  %v356 = vpop.f32.mrb[0].mxu0
  %v357 = vadd.f32 0.0, %v356
  %v358 = vpop.f32.mrb[0].mxu0
  %359 = vdwg.mxu0
  %v360 = vadd.f32 %v287, %v357
  %v361 = vxor.u32 %v360, 2147483648
  %v362 = vmul.f32 %v361, 1.442695
  %v363 = vpow.pop %v362
  %v364 = vadd.f32 %v363, 1.0
  %v365 = vrcp.pop %v364
  %v366 = vmul.f32 1.0, %v365
  %v367 = vtanh.pop %v360
  %v368 = vmul.f32 %v366, %v275
  %370 = vrot.lane.b32.xlu0 %v367, 64
  %v371 = vpop.permute.xlu0 %370
  %v373 = vmul.f32 %v366, %v371
  %375 = vrot.lane.b32.xlu0 %v373, 32
  %v376 = vpop.permute.xlu0 %375
  %v378 = vadd.f32 %v368, %v376
  %v379 = vtanh.pop %v378
  %381 = vrot.lane.b32.xlu0 %v379, 64
  %v382 = vpop.permute.xlu0 %381
  %v384 = vmul.f32 %v366, %v382
  %386 = vrot.lane.b32.xlu0 %v384, 32
  %v387 = vpop.permute.xlu0 %386
  %389 = vst.msk [vmem:[#allocation3 + $0x8] sm:$0xff] %vm183, %v387
  %v390 = vld [vmem:[#allocation2 + $0x10] sm:$0xff]
  %v391 = vsel %vm183, %v387, 0
  %393 = vmatprep.subr.mxu0 0.0
  %394 = vmatpush1.msra.mxu0 %v178
  %395 = vmatprep.subr.mxu0 0.0
  %396 = vmatpush1.msra.mxu0 %v179
  %397 = vmatprep.subr.mxu0 0.0
  %398 = vmatpush1.msra.mxu0 %v180
  %399 = vmatprep.subr.mxu0 0.0
  %400 = vmatpush1.msra.mxu0 %v181
  %401 = vmatprep.subr.mxu0 0.0
  %402 = vmatpush1.msra.mxu0 0.0
  %403 = vmatprep.subr.mxu0 0.0
  %404 = vmatpush1.msra.mxu0 0.0
  %405 = vmatprep.subr.mxu0 0.0
  %406 = vmatpush1.msra.mxu0 0.0
  %407 = vmatprep.subr.mxu0 0.0
  %408 = vmatpush1.msra.mxu0 0.0
  %409 = vmatprep.subr.mxu0 0.0
  %410 = vmatpush1.msra.mxu0 0.0
  %411 = vmatprep.subr.mxu0 0.0
  %412 = vmatpush1.msra.mxu0 0.0
  %413 = vmatprep.subr.mxu0 0.0
  %414 = vmatpush1.msra.mxu0 0.0
  %415 = vmatprep.subr.mxu0 0.0
  %416 = vmatpush1.msra.mxu0 0.0
  %417 = vmatprep.subr.mxu0 0.0
  %418 = vmatpush1.msra.mxu0 0.0
  %419 = vmatprep.subr.mxu0 0.0
  %420 = vmatpush1.msra.mxu0 0.0
  %421 = vmatprep.subr.mxu0 0.0
  %422 = vmatpush1.msra.mxu0 0.0
  %423 = vmatprep.subr.mxu0 0.0
  %424 = vmatpush1.msra.mxu0 0.0
  %425 = vmatprep.subr.mxu0 0.0
  %426 = vmatpush1.msra.mxu0 0.0
  %427 = vmatprep.subr.mxu0 0.0
  %428 = vmatpush1.msra.mxu0 0.0
  %429 = vmatprep.subr.mxu0 0.0
  %430 = vmatpush1.msra.mxu0 0.0
  %431 = vmatprep.subr.mxu0 0.0
  %432 = vmatpush1.msra.mxu0 0.0
  %433 = vmatprep.subr.mxu0 0.0
  %434 = vmatpush1.msra.mxu0 0.0
  %435 = vmatprep.subr.mxu0 0.0
  %436 = vmatpush1.msra.mxu0 0.0
  %437 = vmatprep.subr.mxu0 0.0
  %438 = vmatpush1.msra.mxu0 0.0
  %439 = vmatprep.subr.mxu0 0.0
  %440 = vmatpush1.msra.mxu0 0.0
  %441 = vmatprep.subr.mxu0 0.0
  %442 = vmatpush1.msra.mxu0 0.0
  %443 = vmatprep.subr.mxu0 0.0
  %444 = vmatpush1.msra.mxu0 0.0
  %445 = vmatprep.subr.mxu0 0.0
  %446 = vmatpush1.msra.mxu0 0.0
  %447 = vmatprep.subr.mxu0 0.0
  %448 = vmatpush1.msra.mxu0 0.0
  %449 = vmatprep.subr.mxu0 0.0
  %450 = vmatpush1.msra.mxu0 0.0
  %451 = vmatprep.subr.mxu0 0.0
  %452 = vmatpush1.msra.mxu0 0.0
  %453 = vmatprep.subr.mxu0 0.0
  %454 = vmatpush1.msra.mxu0 0.0
  %455 = vmatprep.subr.mxu0 0.0
  %456 = vmatpush1.msra.mxu0 0.0
  %457 = vmatprep.mubr.f32.mxu0 0.0
  %458 = vmatmul.mubr.f32.gmra.mrb[0].mxu0 %v391
  %v459 = vpop.f32.mrb[0].mxu0
  %v460 = vadd.f32 0.0, %v459
  %v461 = vpop.f32.mrb[0].mxu0
  %462 = vdwg.mxu0
  %v463 = vadd.f32 %v390, %v460
  %v464 = vxor.u32 %v463, 2147483648
  %v465 = vmul.f32 %v464, 1.442695
  %v466 = vpow.pop %v465
  %v467 = vadd.f32 %v466, 1.0
  %v468 = vrcp.pop %v467
  %v469 = vmul.f32 1.0, %v468
  %v470 = vtanh.pop %v463
  %v471 = vmul.f32 %v469, %v378
  %473 = vrot.lane.b32.xlu0 %v470, 64
  %v474 = vpop.permute.xlu0 %473
  %v476 = vmul.f32 %v469, %v474
  %478 = vrot.lane.b32.xlu0 %v476, 32
  %v479 = vpop.permute.xlu0 %478
  %v481 = vadd.f32 %v471, %v479
  %v482 = vtanh.pop %v481
  %484 = vrot.lane.b32.xlu0 %v482, 64
  %v485 = vpop.permute.xlu0 %484
  %v487 = vmul.f32 %v469, %v485
  %489 = vrot.lane.b32.xlu0 %v487, 32
  %v490 = vpop.permute.xlu0 %489
  %492 = vst.msk [vmem:[#allocation3 + $0x10] sm:$0xff] %vm183, %v490
  %v493 = vld [vmem:[#allocation2 + $0x18] sm:$0xff]
  %v494 = vsel %vm183, %v490, 0
  %496 = vmatprep.subr.mxu0 0.0
  %497 = vmatpush1.msra.mxu0 %v178
  %498 = vmatprep.subr.mxu0 0.0
  %499 = vmatpush1.msra.mxu0 %v179
  %500 = vmatprep.subr.mxu0 0.0
  %501 = vmatpush1.msra.mxu0 %v180
  %502 = vmatprep.subr.mxu0 0.0
  %503 = vmatpush1.msra.mxu0 %v181
  %504 = vmatprep.subr.mxu0 0.0
  %505 = vmatpush1.msra.mxu0 0.0
  %506 = vmatprep.subr.mxu0 0.0
  %507 = vmatpush1.msra.mxu0 0.0
  %508 = vmatprep.subr.mxu0 0.0
  %509 = vmatpush1.msra.mxu0 0.0
  %510 = vmatprep.subr.mxu0 0.0
  %511 = vmatpush1.msra.mxu0 0.0
  %512 = vmatprep.subr.mxu0 0.0
  %513 = vmatpush1.msra.mxu0 0.0
  %514 = vmatprep.subr.mxu0 0.0
  %515 = vmatpush1.msra.mxu0 0.0
  %516 = vmatprep.subr.mxu0 0.0
  %517 = vmatpush1.msra.mxu0 0.0
  %518 = vmatprep.subr.mxu0 0.0
  %519 = vmatpush1.msra.mxu0 0.0
  %520 = vmatprep.subr.mxu0 0.0
  %521 = vmatpush1.msra.mxu0 0.0
  %522 = vmatprep.subr.mxu0 0.0
  %523 = vmatpush1.msra.mxu0 0.0
  %524 = vmatprep.subr.mxu0 0.0
  %525 = vmatpush1.msra.mxu0 0.0
  %526 = vmatprep.subr.mxu0 0.0
  %527 = vmatpush1.msra.mxu0 0.0
  %528 = vmatprep.subr.mxu0 0.0
  %529 = vmatpush1.msra.mxu0 0.0
  %530 = vmatprep.subr.mxu0 0.0
  %531 = vmatpush1.msra.mxu0 0.0
  %532 = vmatprep.subr.mxu0 0.0
  %533 = vmatpush1.msra.mxu0 0.0
  %534 = vmatprep.subr.mxu0 0.0
  %535 = vmatpush1.msra.mxu0 0.0
  %536 = vmatprep.subr.mxu0 0.0
  %537 = vmatpush1.msra.mxu0 0.0
  %538 = vmatprep.subr.mxu0 0.0
  %539 = vmatpush1.msra.mxu0 0.0
  %540 = vmatprep.subr.mxu0 0.0
  %541 = vmatpush1.msra.mxu0 0.0
  %542 = vmatprep.subr.mxu0 0.0
  %543 = vmatpush1.msra.mxu0 0.0
  %544 = vmatprep.subr.mxu0 0.0
  %545 = vmatpush1.msra.mxu0 0.0
  %546 = vmatprep.subr.mxu0 0.0
  %547 = vmatpush1.msra.mxu0 0.0
  %548 = vmatprep.subr.mxu0 0.0
  %549 = vmatpush1.msra.mxu0 0.0
  %550 = vmatprep.subr.mxu0 0.0
  %551 = vmatpush1.msra.mxu0 0.0
  %552 = vmatprep.subr.mxu0 0.0
  %553 = vmatpush1.msra.mxu0 0.0
  %554 = vmatprep.subr.mxu0 0.0
  %555 = vmatpush1.msra.mxu0 0.0
  %556 = vmatprep.subr.mxu0 0.0
  %557 = vmatpush1.msra.mxu0 0.0
  %558 = vmatprep.subr.mxu0 0.0
  %559 = vmatpush1.msra.mxu0 0.0
  %560 = vmatprep.mubr.f32.mxu0 0.0
  %561 = vmatmul.mubr.f32.gmra.mrb[0].mxu0 %v494
  %v562 = vpop.f32.mrb[0].mxu0
  %v563 = vadd.f32 0.0, %v562
  %v564 = vpop.f32.mrb[0].mxu0
  %565 = vdwg.mxu0
  %v566 = vadd.f32 %v493, %v563
  %v567 = vxor.u32 %v566, 2147483648
  %v568 = vmul.f32 %v567, 1.442695
  %v569 = vpow.pop %v568
  %v570 = vadd.f32 %v569, 1.0
  %v571 = vrcp.pop %v570
  %v572 = vmul.f32 1.0, %v571
  %v573 = vtanh.pop %v566
  %v574 = vmul.f32 %v572, %v481
  %576 = vrot.lane.b32.xlu0 %v573, 64
  %v577 = vpop.permute.xlu0 %576
  %v579 = vmul.f32 %v572, %v577
  %581 = vrot.lane.b32.xlu0 %v579, 32
  %v582 = vpop.permute.xlu0 %581
  %v584 = vadd.f32 %v574, %v582
  %v585 = vtanh.pop %v584
  %587 = vrot.lane.b32.xlu0 %v585, 64
  %v588 = vpop.permute.xlu0 %587
  %v590 = vmul.f32 %v572, %v588
  %592 = vrot.lane.b32.xlu0 %v590, 32
  %v593 = vpop.permute.xlu0 %592
  %595 = vst.msk [vmem:[#allocation3 + $0x18] sm:$0xff] %vm183, %v593
  %v596 = vld [vmem:[#allocation2 + $0x20] sm:$0xff]
  %v597 = vsel %vm183, %v593, 0
  %599 = vmatprep.subr.mxu0 0.0
  %600 = vmatpush1.msra.mxu0 %v178
  %601 = vmatprep.subr.mxu0 0.0
  %602 = vmatpush1.msra.mxu0 %v179
  %603 = vmatprep.subr.mxu0 0.0
  %604 = vmatpush1.msra.mxu0 %v180
  %605 = vmatprep.subr.mxu0 0.0
  %606 = vmatpush1.msra.mxu0 %v181
  %607 = vmatprep.subr.mxu0 0.0
  %608 = vmatpush1.msra.mxu0 0.0
  %609 = vmatprep.subr.mxu0 0.0
  %610 = vmatpush1.msra.mxu0 0.0
  %611 = vmatprep.subr.mxu0 0.0
  %612 = vmatpush1.msra.mxu0 0.0
  %613 = vmatprep.subr.mxu0 0.0
  %614 = vmatpush1.msra.mxu0 0.0
  %615 = vmatprep.subr.mxu0 0.0
  %616 = vmatpush1.msra.mxu0 0.0
  %617 = vmatprep.subr.mxu0 0.0
  %618 = vmatpush1.msra.mxu0 0.0
  %619 = vmatprep.subr.mxu0 0.0
  %620 = vmatpush1.msra.mxu0 0.0
  %621 = vmatprep.subr.mxu0 0.0
  %622 = vmatpush1.msra.mxu0 0.0
  %623 = vmatprep.subr.mxu0 0.0
  %624 = vmatpush1.msra.mxu0 0.0
  %625 = vmatprep.subr.mxu0 0.0
  %626 = vmatpush1.msra.mxu0 0.0
  %627 = vmatprep.subr.mxu0 0.0
  %628 = vmatpush1.msra.mxu0 0.0
  %629 = vmatprep.subr.mxu0 0.0
  %630 = vmatpush1.msra.mxu0 0.0
  %631 = vmatprep.subr.mxu0 0.0
  %632 = vmatpush1.msra.mxu0 0.0
  %633 = vmatprep.subr.mxu0 0.0
  %634 = vmatpush1.msra.mxu0 0.0
  %635 = vmatprep.subr.mxu0 0.0
  %636 = vmatpush1.msra.mxu0 0.0
  %637 = vmatprep.subr.mxu0 0.0
  %638 = vmatpush1.msra.mxu0 0.0
  %639 = vmatprep.subr.mxu0 0.0
  %640 = vmatpush1.msra.mxu0 0.0
  %641 = vmatprep.subr.mxu0 0.0
  %642 = vmatpush1.msra.mxu0 0.0
  %643 = vmatprep.subr.mxu0 0.0
  %644 = vmatpush1.msra.mxu0 0.0
  %645 = vmatprep.subr.mxu0 0.0
  %646 = vmatpush1.msra.mxu0 0.0
  %647 = vmatprep.subr.mxu0 0.0
  %648 = vmatpush1.msra.mxu0 0.0
  %649 = vmatprep.subr.mxu0 0.0
  %650 = vmatpush1.msra.mxu0 0.0
  %651 = vmatprep.subr.mxu0 0.0
  %652 = vmatpush1.msra.mxu0 0.0
  %653 = vmatprep.subr.mxu0 0.0
  %654 = vmatpush1.msra.mxu0 0.0
  %655 = vmatprep.subr.mxu0 0.0
  %656 = vmatpush1.msra.mxu0 0.0
  %657 = vmatprep.subr.mxu0 0.0
  %658 = vmatpush1.msra.mxu0 0.0
  %659 = vmatprep.subr.mxu0 0.0
  %660 = vmatpush1.msra.mxu0 0.0
  %661 = vmatprep.subr.mxu0 0.0
  %662 = vmatpush1.msra.mxu0 0.0
  %663 = vmatprep.mubr.f32.mxu0 0.0
  %664 = vmatmul.mubr.f32.gmra.mrb[0].mxu0 %v597
  %v665 = vpop.f32.mrb[0].mxu0
  %v666 = vadd.f32 0.0, %v665
  %v667 = vpop.f32.mrb[0].mxu0
  %668 = vdwg.mxu0
  %v669 = vadd.f32 %v596, %v666
  %v670 = vxor.u32 %v669, 2147483648
  %v671 = vmul.f32 %v670, 1.442695
  %v672 = vpow.pop %v671
  %v673 = vadd.f32 %v672, 1.0
  %v674 = vrcp.pop %v673
  %v675 = vmul.f32 1.0, %v674
  %v676 = vtanh.pop %v669
  %v677 = vmul.f32 %v675, %v584
  %679 = vrot.lane.b32.xlu0 %v676, 64
  %v680 = vpop.permute.xlu0 %679
  %v682 = vmul.f32 %v675, %v680
  %684 = vrot.lane.b32.xlu0 %v682, 32
  %v685 = vpop.permute.xlu0 %684
  %v687 = vadd.f32 %v677, %v685
  %v688 = vtanh.pop %v687
  %690 = vrot.lane.b32.xlu0 %v688, 64
  %v691 = vpop.permute.xlu0 %690
  %v693 = vmul.f32 %v675, %v691
  %695 = vrot.lane.b32.xlu0 %v693, 32
  %v696 = vpop.permute.xlu0 %695
  %698 = vst.msk [vmem:[#allocation3 + $0x20] sm:$0xff] %vm183, %v696
  %v699 = vld [vmem:[#allocation2 + $0x28] sm:$0xff]
  %v700 = vsel %vm183, %v696, 0
  %702 = vmatprep.subr.mxu0 0.0
  %703 = vmatpush1.msra.mxu0 %v178
  %704 = vmatprep.subr.mxu0 0.0
  %705 = vmatpush1.msra.mxu0 %v179
  %706 = vmatprep.subr.mxu0 0.0
  %707 = vmatpush1.msra.mxu0 %v180
  %708 = vmatprep.subr.mxu0 0.0
  %709 = vmatpush1.msra.mxu0 %v181
  %710 = vmatprep.subr.mxu0 0.0
  %711 = vmatpush1.msra.mxu0 0.0
  %712 = vmatprep.subr.mxu0 0.0
  %713 = vmatpush1.msra.mxu0 0.0
  %714 = vmatprep.subr.mxu0 0.0
  %715 = vmatpush1.msra.mxu0 0.0
  %716 = vmatprep.subr.mxu0 0.0
  %717 = vmatpush1.msra.mxu0 0.0
  %718 = vmatprep.subr.mxu0 0.0
  %719 = vmatpush1.msra.mxu0 0.0
  %720 = vmatprep.subr.mxu0 0.0
  %721 = vmatpush1.msra.mxu0 0.0
  %722 = vmatprep.subr.mxu0 0.0
  %723 = vmatpush1.msra.mxu0 0.0
  %724 = vmatprep.subr.mxu0 0.0
  %725 = vmatpush1.msra.mxu0 0.0
  %726 = vmatprep.subr.mxu0 0.0
  %727 = vmatpush1.msra.mxu0 0.0
  %728 = vmatprep.subr.mxu0 0.0
  %729 = vmatpush1.msra.mxu0 0.0
  %730 = vmatprep.subr.mxu0 0.0
  %731 = vmatpush1.msra.mxu0 0.0
  %732 = vmatprep.subr.mxu0 0.0
  %733 = vmatpush1.msra.mxu0 0.0
  %734 = vmatprep.subr.mxu0 0.0
  %735 = vmatpush1.msra.mxu0 0.0
  %736 = vmatprep.subr.mxu0 0.0
  %737 = vmatpush1.msra.mxu0 0.0
  %738 = vmatprep.subr.mxu0 0.0
  %739 = vmatpush1.msra.mxu0 0.0
  %740 = vmatprep.subr.mxu0 0.0
  %741 = vmatpush1.msra.mxu0 0.0
  %742 = vmatprep.subr.mxu0 0.0
  %743 = vmatpush1.msra.mxu0 0.0
  %744 = vmatprep.subr.mxu0 0.0
  %745 = vmatpush1.msra.mxu0 0.0
  %746 = vmatprep.subr.mxu0 0.0
  %747 = vmatpush1.msra.mxu0 0.0
  %748 = vmatprep.subr.mxu0 0.0
  %749 = vmatpush1.msra.mxu0 0.0
  %750 = vmatprep.subr.mxu0 0.0
  %751 = vmatpush1.msra.mxu0 0.0
  %752 = vmatprep.subr.mxu0 0.0
  %753 = vmatpush1.msra.mxu0 0.0
  %754 = vmatprep.subr.mxu0 0.0
  %755 = vmatpush1.msra.mxu0 0.0
  %756 = vmatprep.subr.mxu0 0.0
  %757 = vmatpush1.msra.mxu0 0.0
  %758 = vmatprep.subr.mxu0 0.0
  %759 = vmatpush1.msra.mxu0 0.0
  %760 = vmatprep.subr.mxu0 0.0
  %761 = vmatpush1.msra.mxu0 0.0
  %762 = vmatprep.subr.mxu0 0.0
  %763 = vmatpush1.msra.mxu0 0.0
  %764 = vmatprep.subr.mxu0 0.0
  %765 = vmatpush1.msra.mxu0 0.0
  %766 = vmatprep.mubr.f32.mxu0 0.0
  %767 = vmatmul.mubr.f32.gmra.mrb[0].mxu0 %v700
  %v768 = vpop.f32.mrb[0].mxu0
  %v769 = vadd.f32 0.0, %v768
  %v770 = vpop.f32.mrb[0].mxu0
  %771 = vdwg.mxu0
  %v772 = vadd.f32 %v699, %v769
  %v773 = vxor.u32 %v772, 2147483648
  %v774 = vmul.f32 %v773, 1.442695
  %v775 = vpow.pop %v774
  %v776 = vadd.f32 %v775, 1.0
  %v777 = vrcp.pop %v776
  %v778 = vmul.f32 1.0, %v777
  %v779 = vtanh.pop %v772
  %v780 = vmul.f32 %v778, %v687
  %782 = vrot.lane.b32.xlu0 %v779, 64
  %v783 = vpop.permute.xlu0 %782
  %v785 = vmul.f32 %v778, %v783
  %787 = vrot.lane.b32.xlu0 %v785, 32
  %v788 = vpop.permute.xlu0 %787
  %v790 = vadd.f32 %v780, %v788
  %v791 = vtanh.pop %v790
  %793 = vrot.lane.b32.xlu0 %v791, 64
  %v794 = vpop.permute.xlu0 %793
  %v796 = vmul.f32 %v778, %v794
  %798 = vrot.lane.b32.xlu0 %v796, 32
  %v799 = vpop.permute.xlu0 %798
  %801 = vst.msk [vmem:[#allocation3 + $0x28] sm:$0xff] %vm183, %v799
  %v802 = vld [vmem:[#allocation2 + $0x30] sm:$0xff]
  %v803 = vsel %vm183, %v799, 0
  %805 = vmatprep.subr.mxu0 0.0
  %806 = vmatpush1.msra.mxu0 %v178
  %807 = vmatprep.subr.mxu0 0.0
  %808 = vmatpush1.msra.mxu0 %v179
  %809 = vmatprep.subr.mxu0 0.0
  %810 = vmatpush1.msra.mxu0 %v180
  %811 = vmatprep.subr.mxu0 0.0
  %812 = vmatpush1.msra.mxu0 %v181
  %813 = vmatprep.subr.mxu0 0.0
  %814 = vmatpush1.msra.mxu0 0.0
  %815 = vmatprep.subr.mxu0 0.0
  %816 = vmatpush1.msra.mxu0 0.0
  %817 = vmatprep.subr.mxu0 0.0
  %818 = vmatpush1.msra.mxu0 0.0
  %819 = vmatprep.subr.mxu0 0.0
  %820 = vmatpush1.msra.mxu0 0.0
  %821 = vmatprep.subr.mxu0 0.0
  %822 = vmatpush1.msra.mxu0 0.0
  %823 = vmatprep.subr.mxu0 0.0
  %824 = vmatpush1.msra.mxu0 0.0
  %825 = vmatprep.subr.mxu0 0.0
  %826 = vmatpush1.msra.mxu0 0.0
  %827 = vmatprep.subr.mxu0 0.0
  %828 = vmatpush1.msra.mxu0 0.0
  %829 = vmatprep.subr.mxu0 0.0
  %830 = vmatpush1.msra.mxu0 0.0
  %831 = vmatprep.subr.mxu0 0.0
  %832 = vmatpush1.msra.mxu0 0.0
  %833 = vmatprep.subr.mxu0 0.0
  %834 = vmatpush1.msra.mxu0 0.0
  %835 = vmatprep.subr.mxu0 0.0
  %836 = vmatpush1.msra.mxu0 0.0
  %837 = vmatprep.subr.mxu0 0.0
  %838 = vmatpush1.msra.mxu0 0.0
  %839 = vmatprep.subr.mxu0 0.0
  %840 = vmatpush1.msra.mxu0 0.0
  %841 = vmatprep.subr.mxu0 0.0
  %842 = vmatpush1.msra.mxu0 0.0
  %843 = vmatprep.subr.mxu0 0.0
  %844 = vmatpush1.msra.mxu0 0.0
  %845 = vmatprep.subr.mxu0 0.0
  %846 = vmatpush1.msra.mxu0 0.0
  %847 = vmatprep.subr.mxu0 0.0
  %848 = vmatpush1.msra.mxu0 0.0
  %849 = vmatprep.subr.mxu0 0.0
  %850 = vmatpush1.msra.mxu0 0.0
  %851 = vmatprep.subr.mxu0 0.0
  %852 = vmatpush1.msra.mxu0 0.0
  %853 = vmatprep.subr.mxu0 0.0
  %854 = vmatpush1.msra.mxu0 0.0
  %855 = vmatprep.subr.mxu0 0.0
  %856 = vmatpush1.msra.mxu0 0.0
  %857 = vmatprep.subr.mxu0 0.0
  %858 = vmatpush1.msra.mxu0 0.0
  %859 = vmatprep.subr.mxu0 0.0
  %860 = vmatpush1.msra.mxu0 0.0
  %861 = vmatprep.subr.mxu0 0.0
  %862 = vmatpush1.msra.mxu0 0.0
  %863 = vmatprep.subr.mxu0 0.0
  %864 = vmatpush1.msra.mxu0 0.0
  %865 = vmatprep.subr.mxu0 0.0
  %866 = vmatpush1.msra.mxu0 0.0
  %867 = vmatprep.subr.mxu0 0.0
  %868 = vmatpush1.msra.mxu0 0.0
  %869 = vmatprep.mubr.f32.mxu0 0.0
  %870 = vmatmul.mubr.f32.gmra.mrb[0].mxu0 %v803
  %v871 = vpop.f32.mrb[0].mxu0
  %v872 = vadd.f32 0.0, %v871
  %v873 = vpop.f32.mrb[0].mxu0
  %874 = vdwg.mxu0
  %v875 = vadd.f32 %v802, %v872
  %v876 = vxor.u32 %v875, 2147483648
  %v877 = vmul.f32 %v876, 1.442695
  %v878 = vpow.pop %v877
  %v879 = vadd.f32 %v878, 1.0
  %v880 = vrcp.pop %v879
  %v881 = vmul.f32 1.0, %v880
  %v882 = vtanh.pop %v875
  %v883 = vmul.f32 %v881, %v790
  %885 = vrot.lane.b32.xlu0 %v882, 64
  %v886 = vpop.permute.xlu0 %885
  %v888 = vmul.f32 %v881, %v886
  %890 = vrot.lane.b32.xlu0 %v888, 32
  %v891 = vpop.permute.xlu0 %890
  %v893 = vadd.f32 %v883, %v891
  %v894 = vtanh.pop %v893
  %896 = vrot.lane.b32.xlu0 %v894, 64
  %v897 = vpop.permute.xlu0 %896
  %v899 = vmul.f32 %v881, %v897
  %901 = vrot.lane.b32.xlu0 %v899, 32
  %v902 = vpop.permute.xlu0 %901
  %904 = vst.msk [vmem:[#allocation3 + $0x30] sm:$0xff] %vm183, %v902
  %v905 = vld [vmem:[#allocation2 + $0x38] sm:$0xff]
  %v906 = vsel %vm183, %v902, 0
  %908 = vmatprep.subr.mxu0 0.0
  %909 = vmatpush1.msra.mxu0 %v178
  %910 = vmatprep.subr.mxu0 0.0
  %911 = vmatpush1.msra.mxu0 %v179
  %912 = vmatprep.subr.mxu0 0.0
  %913 = vmatpush1.msra.mxu0 %v180
  %914 = vmatprep.subr.mxu0 0.0
  %915 = vmatpush1.msra.mxu0 %v181
  %916 = vmatprep.subr.mxu0 0.0
  %917 = vmatpush1.msra.mxu0 0.0
  %918 = vmatprep.subr.mxu0 0.0
  %919 = vmatpush1.msra.mxu0 0.0
  %920 = vmatprep.subr.mxu0 0.0
  %921 = vmatpush1.msra.mxu0 0.0
  %922 = vmatprep.subr.mxu0 0.0
  %923 = vmatpush1.msra.mxu0 0.0
  %924 = vmatprep.subr.mxu0 0.0
  %925 = vmatpush1.msra.mxu0 0.0
  %926 = vmatprep.subr.mxu0 0.0
  %927 = vmatpush1.msra.mxu0 0.0
  %928 = vmatprep.subr.mxu0 0.0
  %929 = vmatpush1.msra.mxu0 0.0
  %930 = vmatprep.subr.mxu0 0.0
  %931 = vmatpush1.msra.mxu0 0.0
  %932 = vmatprep.subr.mxu0 0.0
  %933 = vmatpush1.msra.mxu0 0.0
  %934 = vmatprep.subr.mxu0 0.0
  %935 = vmatpush1.msra.mxu0 0.0
  %936 = vmatprep.subr.mxu0 0.0
  %937 = vmatpush1.msra.mxu0 0.0
  %938 = vmatprep.subr.mxu0 0.0
  %939 = vmatpush1.msra.mxu0 0.0
  %940 = vmatprep.subr.mxu0 0.0
  %941 = vmatpush1.msra.mxu0 0.0
  %942 = vmatprep.subr.mxu0 0.0
  %943 = vmatpush1.msra.mxu0 0.0
  %944 = vmatprep.subr.mxu0 0.0
  %945 = vmatpush1.msra.mxu0 0.0
  %946 = vmatprep.subr.mxu0 0.0
  %947 = vmatpush1.msra.mxu0 0.0
  %948 = vmatprep.subr.mxu0 0.0
  %949 = vmatpush1.msra.mxu0 0.0
  %950 = vmatprep.subr.mxu0 0.0
  %951 = vmatpush1.msra.mxu0 0.0
  %952 = vmatprep.subr.mxu0 0.0
  %953 = vmatpush1.msra.mxu0 0.0
  %954 = vmatprep.subr.mxu0 0.0
  %955 = vmatpush1.msra.mxu0 0.0
  %956 = vmatprep.subr.mxu0 0.0
  %957 = vmatpush1.msra.mxu0 0.0
  %958 = vmatprep.subr.mxu0 0.0
  %959 = vmatpush1.msra.mxu0 0.0
  %960 = vmatprep.subr.mxu0 0.0
  %961 = vmatpush1.msra.mxu0 0.0
  %962 = vmatprep.subr.mxu0 0.0
  %963 = vmatpush1.msra.mxu0 0.0
  %964 = vmatprep.subr.mxu0 0.0
  %965 = vmatpush1.msra.mxu0 0.0
  %966 = vmatprep.subr.mxu0 0.0
  %967 = vmatpush1.msra.mxu0 0.0
  %968 = vmatprep.subr.mxu0 0.0
  %969 = vmatpush1.msra.mxu0 0.0
  %970 = vmatprep.subr.mxu0 0.0
  %971 = vmatpush1.msra.mxu0 0.0
  %972 = vmatprep.mubr.f32.mxu0 0.0
  %973 = vmatmul.mubr.f32.gmra.mrb[0].mxu0 %v906
  %v974 = vpop.f32.mrb[0].mxu0
  %v975 = vadd.f32 0.0, %v974
  %v976 = vpop.f32.mrb[0].mxu0
  %977 = vdwg.mxu0
  %v978 = vadd.f32 %v905, %v975
  %v979 = vxor.u32 %v978, 2147483648
  %v980 = vmul.f32 %v979, 1.442695
  %v981 = vpow.pop %v980
  %v982 = vadd.f32 %v981, 1.0
  %v983 = vrcp.pop %v982
  %v984 = vmul.f32 1.0, %v983
  %v985 = vtanh.pop %v978
  %v986 = vmul.f32 %v984, %v893
  %988 = vrot.lane.b32.xlu0 %v985, 64
  %v989 = vpop.permute.xlu0 %988
  %v991 = vmul.f32 %v984, %v989
  %993 = vrot.lane.b32.xlu0 %v991, 32
  %v994 = vpop.permute.xlu0 %993
  %v996 = vadd.f32 %v986, %v994
  %v997 = vtanh.pop %v996
  %999 = vrot.lane.b32.xlu0 %v997, 64
  %v1000 = vpop.permute.xlu0 %999
  %v1002 = vmul.f32 %v984, %v1000
  %1004 = vrot.lane.b32.xlu0 %v1002, 32
  %v1005 = vpop.permute.xlu0 %1004
  %1007 = vst.msk [vmem:[#allocation3 + $0x38] sm:$0xff] %vm183, %v1005
  %v1008 = vld [vmem:[#allocation3] sm:$0xff]
  %v1009 = vld [vmem:[#allocation3 + $0x8] sm:$0xff]
  %v1010 = vld [vmem:[#allocation3 + $0x10] sm:$0xff]
  %v1011 = vld [vmem:[#allocation3 + $0x18] sm:$0xff]
  %v1012 = vld [vmem:[#allocation3 + $0x20] sm:$0xff]
  %v1013 = vld [vmem:[#allocation3 + $0x28] sm:$0xff]
  %v1014 = vld [vmem:[#allocation3 + $0x30] sm:$0xff]
  %v1015 = vld [vmem:[#allocation3 + $0x38] sm:$0xff]
  %v1016 = vld [vmem:[%s4] sm:$0xff]
  %v1017 = vld [vmem:[%s4 + $0x8] sm:$0xff]
  %v1018 = vld [vmem:[%s4 + $0x10] sm:$0xff]
  %v1019 = vld [vmem:[%s4 + $0x18] sm:$0xff]
  %v1020 = vld [vmem:[%s5] sm:$0x1]
  %v1022 = vlaneseq
  %v1023 = vshrl.u32 %v1022, 7
  %v1024 = vsub.s32 0, %v1023
  %v1025 = vrot.slane %v1020, %v1024
  %v1028 = vsel %vm183, %v1008, 0
  %v1031 = vsel %vm183, %v1009, 0
  %v1034 = vsel %vm183, %v1010, 0
  %v1037 = vsel %vm183, %v1011, 0
  %v1040 = vsel %vm183, %v1012, 0
  %v1043 = vsel %vm183, %v1013, 0
  %v1046 = vsel %vm183, %v1014, 0
  %v1049 = vsel %vm183, %v1015, 0
  %1051 = vmatprep.subr.mxu0 0.0
  %1052 = vmatpush1.msra.mxu0 %v1016
  %1053 = vmatprep.subr.mxu0 0.0
  %1054 = vmatpush1.msra.mxu0 %v1017
  %1055 = vmatprep.subr.mxu0 0.0
  %1056 = vmatpush1.msra.mxu0 %v1018
  %1057 = vmatprep.subr.mxu0 0.0
  %1058 = vmatpush1.msra.mxu0 %v1019
  %1059 = vmatprep.subr.mxu0 0.0
  %1060 = vmatpush1.msra.mxu0 0.0
  %1061 = vmatprep.subr.mxu0 0.0
  %1062 = vmatpush1.msra.mxu0 0.0
  %1063 = vmatprep.subr.mxu0 0.0
  %1064 = vmatpush1.msra.mxu0 0.0
  %1065 = vmatprep.subr.mxu0 0.0
  %1066 = vmatpush1.msra.mxu0 0.0
  %1067 = vmatprep.subr.mxu0 0.0
  %1068 = vmatpush1.msra.mxu0 0.0
  %1069 = vmatprep.subr.mxu0 0.0
  %1070 = vmatpush1.msra.mxu0 0.0
  %1071 = vmatprep.subr.mxu0 0.0
  %1072 = vmatpush1.msra.mxu0 0.0
  %1073 = vmatprep.subr.mxu0 0.0
  %1074 = vmatpush1.msra.mxu0 0.0
  %1075 = vmatprep.subr.mxu0 0.0
  %1076 = vmatpush1.msra.mxu0 0.0
  %1077 = vmatprep.subr.mxu0 0.0
  %1078 = vmatpush1.msra.mxu0 0.0
  %1079 = vmatprep.subr.mxu0 0.0
  %1080 = vmatpush1.msra.mxu0 0.0
  %1081 = vmatprep.subr.mxu0 0.0
  %1082 = vmatpush1.msra.mxu0 0.0
  %1083 = vmatprep.subr.mxu0 0.0
  %1084 = vmatpush1.msra.mxu0 0.0
  %1085 = vmatprep.subr.mxu0 0.0
  %1086 = vmatpush1.msra.mxu0 0.0
  %1087 = vmatprep.subr.mxu0 0.0
  %1088 = vmatpush1.msra.mxu0 0.0
  %1089 = vmatprep.subr.mxu0 0.0
  %1090 = vmatpush1.msra.mxu0 0.0
  %1091 = vmatprep.subr.mxu0 0.0
  %1092 = vmatpush1.msra.mxu0 0.0
  %1093 = vmatprep.subr.mxu0 0.0
  %1094 = vmatpush1.msra.mxu0 0.0
  %1095 = vmatprep.subr.mxu0 0.0
  %1096 = vmatpush1.msra.mxu0 0.0
  %1097 = vmatprep.subr.mxu0 0.0
  %1098 = vmatpush1.msra.mxu0 0.0
  %1099 = vmatprep.subr.mxu0 0.0
  %1100 = vmatpush1.msra.mxu0 0.0
  %1101 = vmatprep.subr.mxu0 0.0
  %1102 = vmatpush1.msra.mxu0 0.0
  %1103 = vmatprep.subr.mxu0 0.0
  %1104 = vmatpush1.msra.mxu0 0.0
  %1105 = vmatprep.subr.mxu0 0.0
  %1106 = vmatpush1.msra.mxu0 0.0
  %1107 = vmatprep.subr.mxu0 0.0
  %1108 = vmatpush1.msra.mxu0 0.0
  %1109 = vmatprep.subr.mxu0 0.0
  %1110 = vmatpush1.msra.mxu0 0.0
  %1111 = vmatprep.subr.mxu0 0.0
  %1112 = vmatpush1.msra.mxu0 0.0
  %1113 = vmatprep.subr.mxu0 0.0
  %1114 = vmatpush1.msra.mxu0 0.0
  %1115 = vmatprep.mubr.f32.mxu0 0.0
  %1116 = vmatmul.mubr.f32.gmra.mrb[0].mxu0 %v1028
  %v1117 = vpop.f32.mrb[0].mxu0
  %v1118 = vadd.f32 %v1025, %v1117
  %v1119 = vpop.f32.mrb[0].mxu0
  %1120 = vmatprep.mubr.f32.mxu0 0.0
  %1121 = vmatmul.mubr.f32.gmra.mrb[0].mxu0 %v1031
  %v1122 = vpop.f32.mrb[0].mxu0
  %v1123 = vadd.f32 %v1025, %v1122
  %v1124 = vpop.f32.mrb[0].mxu0
  %1125 = vmatprep.mubr.f32.mxu0 0.0
  %1126 = vmatmul.mubr.f32.gmra.mrb[0].mxu0 %v1034
  %v1127 = vpop.f32.mrb[0].mxu0
  %v1128 = vadd.f32 %v1025, %v1127
  %v1129 = vpop.f32.mrb[0].mxu0
  %1130 = vmatprep.mubr.f32.mxu0 0.0
  %1131 = vmatmul.mubr.f32.gmra.mrb[0].mxu0 %v1037
  %v1132 = vpop.f32.mrb[0].mxu0
  %v1133 = vadd.f32 %v1025, %v1132
  %v1134 = vpop.f32.mrb[0].mxu0
  %1135 = vmatprep.mubr.f32.mxu0 0.0
  %1136 = vmatmul.mubr.f32.gmra.mrb[0].mxu0 %v1040
  %v1137 = vpop.f32.mrb[0].mxu0
  %v1138 = vadd.f32 %v1025, %v1137
  %v1139 = vpop.f32.mrb[0].mxu0
  %1140 = vmatprep.mubr.f32.mxu0 0.0
  %1141 = vmatmul.mubr.f32.gmra.mrb[0].mxu0 %v1043
  %v1142 = vpop.f32.mrb[0].mxu0
  %v1143 = vadd.f32 %v1025, %v1142
  %v1144 = vpop.f32.mrb[0].mxu0
  %1145 = vmatprep.mubr.f32.mxu0 0.0
  %1146 = vmatmul.mubr.f32.gmra.mrb[0].mxu0 %v1046
  %v1147 = vpop.f32.mrb[0].mxu0
  %v1148 = vadd.f32 %v1025, %v1147
  %v1149 = vpop.f32.mrb[0].mxu0
  %1150 = vmatprep.mubr.f32.mxu0 0.0
  %1151 = vmatmul.mubr.f32.gmra.mrb[0].mxu0 %v1049
  %v1152 = vpop.f32.mrb[0].mxu0
  %v1153 = vadd.f32 %v1025, %v1152
  %v1154 = vpop.f32.mrb[0].mxu0
  %1155 = vdwg.mxu0
  %1156 = vst [vmem:[%s6] sm:$0xff] %v1118
  %1157 = vst [vmem:[%s6 + $0x8] sm:$0xff] %v1123
  %1158 = vst [vmem:[%s6 + $0x10] sm:$0xff] %v1128
  %1159 = vst [vmem:[%s6 + $0x18] sm:$0xff] %v1133
  %1160 = vst [vmem:[%s6 + $0x20] sm:$0xff] %v1138
  %1161 = vst [vmem:[%s6 + $0x28] sm:$0xff] %v1143
  %1162 = vst [vmem:[%s6 + $0x30] sm:$0xff] %v1148
  %1163 = vst [vmem:[%s6 + $0x38] sm:$0xff] %v1153
  // Predicated region
  $region26: #{lstm_head_forward.1} parent=0 // pred_check
    _
  $region27: #{lstm_head_forward.1} parent=0 // pred_check_branch
    %1165 = sbr.rel (0) target = $region29
  $region28: #{lstm_head_forward.1} parent=0 // pred_region
    _
  $region29: #{lstm_head_forward.1} parent=0 // pred_fallthru
    _
  // Predicated region
  $region30: #{lstm_head_forward.1} parent=0 // pred_check
    _
  $region31: #{lstm_head_forward.1} parent=0 // pred_check_branch
    %1167 = sbr.rel (0) target = $region33
  $region32: #{lstm_head_forward.1} parent=0 // pred_region
    _
  $region33: #{lstm_head_forward.1} parent=0 // pred_fallthru
    _

</llo_original>
